<compile_context>
chip_gen: v7x
topology: tpu7x:2x2x1
jax: 0.10.0
libtpu: 0.0.40
codegen_flags: <defaults>
</compile_context>

<pallas_src>
import jax
import jax.numpy as jnp
from jax.experimental import pallas as pl
from jax.experimental.pallas import tpu as pltpu


def _nonlocal_kernel(x_ref, xw_ref,
                     wt_ref, bt_ref,       # theta: (IC, C), (IC, 1)
                     wpg_ref,              # [phi | g] fused: (C, 2*IC), no bias
                     wo_ref, bo_ref,       # W (+BN, +g-bias folded): (C, IC), (C, 1)
                     z_ref):
    """One grid step: Bb batch elements, full spatial extent.

    x_ref : (Bb, C, N)     channels-first, N = T*H*W on the lane axis
    xw_ref: (Bb, 8*Ng, C)  stacked 2x2x2 window view, row r = k*Ng + m
    z_ref : (Bb, C, N)
    """
    IC = wt_ref.shape[0]
    Bb = x_ref.shape[0]
    Ng = xw_ref.shape[1] // 8

    wt, bt = wt_ref[...], bt_ref[...]
    wpg = wpg_ref[...]
    wo, bo = wo_ref[...], bo_ref[...]

    for b in range(Bb):          # static unroll; independent chains fill VLIW slots
        x = x_ref[b]                                                  # (C, N)

        # theta 1x1 conv, channels-first -> (IC, N), queries on lanes.
        theta = jnp.dot(wt, x, preferred_element_type=jnp.float32) + bt

        # phi & g 1x1 convs as ONE matmul over the stacked window view, then
        # MaxPool3d(2) as a running max over the 8 sublane-aligned Ng-row
        # groups (7 VPU maxes).  Biases folded away in the wrapper.
        pg_all = jnp.dot(xw_ref[b], wpg,
                         preferred_element_type=jnp.float32)          # (8*Ng, 2*IC)
        pg = pg_all[0:Ng, :]
        for k in range(1, 8):
            pg = jnp.maximum(pg, pg_all[k * Ng:(k + 1) * Ng, :])      # (Ng, 2*IC)

        # f^T[m, n] = sum_ic phi[m, ic] * theta[ic, n]; IC is tiny (C//2), so
        # unrolled VPU outer-product FMAs, not a <1%-utilized MXU matmul.
        f = pg[:, 0:1] * theta[0:1, :]
        for ic in range(1, IC):
            f = f + pg[:, ic:ic + 1] * theta[ic:ic + 1, :]            # (Ng, N)

        # Softmax over the key axis (axis 0).  Exact reciprocal so that
        # sum_m p == 1 to fp precision (required by the g-bias fold).
        f = f - jnp.max(f, axis=0, keepdims=True)
        p = jnp.exp(f)
        p = p * pl.reciprocal(jnp.sum(p, axis=0, keepdims=True), approx=False)

        # y^T[ic, n] = sum_m g[m, ic] * p[m, n], fused with the BN-folded
        # output 1x1 conv.  g columns live at pg[:, IC + ic].
        wy = wo[:, 0:1] * jnp.sum(pg[:, IC:IC + 1] * p, axis=0, keepdims=True)
        for ic in range(1, IC):
            wy = wy + wo[:, ic:ic + 1] * jnp.sum(
                pg[:, IC + ic:IC + ic + 1] * p, axis=0, keepdims=True)  # (C, N)

        # Residual add; lane-dense unmasked (C, N) store.
        z_ref[b] = (wy + bo + x).astype(z_ref.dtype)


def _multi_tensorcore():
    """Best-effort: True if the default device exposes >1 TensorCore per chip
    (megacore / v7x).  Only picks the grid shape — never affects numerics."""
    try:
        kind = jax.devices()[0].device_kind.lower()
    except Exception:
        return True
    single_tc = ("lite" in kind) or ("v5e" in kind) or ("v6e" in kind)
    return not single_tc


def context_voted_forward(x, params, *, batch_grid=None):
    """x: (B, C, T, H, W) float32 -> (B, C, T, H, W)."""
    B, C, T, H, W = x.shape
    IC = params["w_theta"].shape[1]
    N = T * H * W
    Tn, Hn, Wn = T // 2, H // 2, W // 2
    Ng = Tn * Hn * Wn

    # ---- glue --------------------------------------------------------------
    # Channels-first flat view: a pure reshape of NCDHW (no data movement).
    x_cn = x.reshape(B, C, N)
    # Stacked 2x2x2 window view: row r = k*Ng + m, k = dt*4 + dh*2 + dw,
    # m = tn*Hn*Wn + hn*Wn + wn.  This is the only wrapper transpose; we let
    # XLA fuse it into the pallas_call via allow_input_fusion below.
    x_win = (x.reshape(B, C, Tn, 2, Hn, 2, Wn, 2)
              .transpose(0, 3, 5, 7, 2, 4, 6, 1)
              .reshape(B, 8 * Ng, C))

    # Fold BatchNorm (eval mode) into the output 1x1 conv; fold the g bias
    # into the output bias (sum_m softmax == 1); drop the phi bias entirely
    # (it adds a per-query constant that cancels in the softmax over keys).
    scale = params["bn_gamma"] / jnp.sqrt(params["bn_var"] + 1e-5)
    shift = params["bn_beta"] - params["bn_mean"] * scale
    w_out_t = (params["w_W"] * scale[None, :]).T                     # (C, IC)
    b_out = (params["b_W"] * scale + shift + w_out_t @ params["b_g"])[:, None]  # (C, 1)

    w_theta_t = params["w_theta"].T                                  # (IC, C)
    b_theta = params["b_theta"][:, None]                             # (IC, 1)
    w_pg = jnp.concatenate([params["w_phi"], params["w_g"]], axis=1)  # (C, 2*IC)

    # Grid: single step on single-TC chips (v5e/v6e); one batch per core on
    # multi-TC chips (v7x / megacore), "parallel" semantics.
    if batch_grid is None:
        batch_grid = _multi_tensorcore() and B > 1
    G = B if batch_grid else 1
    Bb = B // G

    def full(shape):
        nd = len(shape)
        # Constant index_map -> block stays resident across grid steps.
        return pl.BlockSpec(shape, lambda b, _nd=nd: (0,) * _nd)

    in_specs = [
        pl.BlockSpec((Bb, C, N), lambda b: (b, 0, 0)),               # x (channels-first)
        pl.BlockSpec((Bb, 8 * Ng, C), lambda b: (b, 0, 0)),          # stacked window view
        full((IC, C)), full((IC, 1)),                                # theta
        full((C, 2 * IC)),                                           # [phi | g]
        full((C, IC)), full((C, 1)),                                 # W (BN + g-bias folded)
    ]

    grid_spec = pltpu.PrefetchScalarGridSpec(
        num_scalar_prefetch=0,
        grid=(G,),
        in_specs=in_specs,
        out_specs=pl.BlockSpec((Bb, C, N), lambda b: (b, 0, 0)),
    )

    # Allow XLA to fuse the x_win reshape/transpose producer (operand 1) into
    # the pallas_call instead of paying a standalone HBM write/read for it.
    allow_fusion = [i == 1 for i in range(len(in_specs))]

    z_cn = pl.pallas_call(
        _nonlocal_kernel,
        out_shape=jax.ShapeDtypeStruct((B, C, N), x.dtype),
        grid_spec=grid_spec,
        compiler_params=pltpu.CompilerParams(
            dimension_semantics=("parallel",),
            allow_input_fusion=allow_fusion),
    )(x_cn, x_win, w_theta_t, b_theta, w_pg, w_out_t, b_out)

    return z_cn.reshape(B, C, T, H, W)                               # free reshape


def reference_forward(x, params):
    """Pure-JAX reference of the module's forward (eval-mode BN)."""
    B, C, T, H, W = x.shape
    IC = params["w_theta"].shape[1]

    def conv(v, w, b):                                               # w: (C_in, C_out)
        return jnp.einsum("bcthw,co->bothw", v, w) + b[None, :, None, None, None]

    def pool(v):                                                     # MaxPool3d(2)
        Bv, OC, Tv, Hv, Wv = v.shape
        return v.reshape(Bv, OC, Tv // 2, 2, Hv // 2, 2, Wv // 2, 2).max(axis=(3, 5, 7))

    theta = conv(x, params["w_theta"], params["b_theta"]).reshape(B, IC, -1)   # (B,IC,N)
    phi = pool(conv(x, params["w_phi"], params["b_phi"])).reshape(B, IC, -1)   # (B,IC,Ng)
    g = pool(conv(x, params["w_g"], params["b_g"])).reshape(B, IC, -1)         # (B,IC,Ng)

    f = jnp.einsum("bin,bim->bnm", theta, phi)                                 # (B,N,Ng)
    p = jax.nn.softmax(f, axis=-1)
    y = jnp.einsum("bnm,bim->bin", p, g)                                       # (B,IC,N)

    wy = jnp.einsum("bin,io->bon", y, params["w_W"]) + params["b_W"][None, :, None]
    scale = params["bn_gamma"] / jnp.sqrt(params["bn_var"] + 1e-5)
    shift = params["bn_beta"] - params["bn_mean"] * scale
    wy = wy * scale[None, :, None] + shift[None, :, None]
    return (wy + x.reshape(B, C, -1)).reshape(B, C, T, H, W)


def init_params(key, C, IC):
    """Shapes/constants matching the module's __init__.

    Conv weights stored as (cin, cout) matrices (1x1x1 conv == channel matmul),
    PyTorch-default uniform(-1/sqrt(fan_in), 1/sqrt(fan_in)).
    BN: weight=0, bias=0 (nn.init.constant_), running stats = (0, 1).
    """
    ks = jax.random.split(key, 8)

    def conv(kw, kb, cin, cout):
        bound = 1.0 / float(cin) ** 0.5
        w = jax.random.uniform(kw, (cin, cout), jnp.float32, -bound, bound)
        b = jax.random.uniform(kb, (cout,), jnp.float32, -bound, bound)
        return w, b

    w_g, b_g = conv(ks[0], ks[1], C, IC)
    w_theta, b_theta = conv(ks[2], ks[3], C, IC)
    w_phi, b_phi = conv(ks[4], ks[5], C, IC)
    w_W, b_W = conv(ks[6], ks[7], IC, C)
    return dict(
        w_g=w_g, b_g=b_g,
        w_theta=w_theta, b_theta=b_theta,
        w_phi=w_phi, b_phi=b_phi,
        w_W=w_W, b_W=b_W,
        bn_gamma=jnp.zeros((C,), jnp.float32),   # nn.init.constant_(W[1].weight, 0)
        bn_beta=jnp.zeros((C,), jnp.float32),    # nn.init.constant_(W[1].bias, 0)
        bn_mean=jnp.zeros((C,), jnp.float32),
        bn_var=jnp.ones((C,), jnp.float32),
    )


if __name__ == "__main__":
    B, C, T, H, W = 2, 4, 4, 8, 8            # (b, c, t, h, w)
    IC = max(C // 2, 1)

    key = jax.random.PRNGKey(0)
    kx, kp = jax.random.split(key)
    x = jax.random.normal(kx, (B, C, T, H, W), jnp.float32)
    params = init_params(kp, C, IC)

    # 1) Module-init path (BN gamma=beta=0): the block is exactly identity.
    z = context_voted_forward(x, params)
    jax.block_until_ready(z)
    assert z.shape == x.shape and z.dtype == x.dtype
    assert bool(jnp.allclose(z, x, atol=1e-5))

    # 2) Non-trivial BN params: validate the full attention path against a
    #    pure-JAX reference.
    params_nz = dict(params)
    params_nz["bn_gamma"] = jnp.ones((C,), jnp.float32)
    params_nz["bn_beta"] = jnp.full((C,), 0.1, jnp.float32)
    params_nz["bn_mean"] = jnp.full((C,), 0.05, jnp.float32)
    params_nz["bn_var"] = jnp.full((C,), 1.3, jnp.float32)

    z2 = context_voted_forward(x, params_nz)
    jax.block_until_ready(z2)
    z2_ref = reference_forward(x, params_nz)
    assert bool(jnp.allclose(z2, z2_ref, atol=1e-2, rtol=1e-2))

    # 3) Exercise both grid variants (single-step and per-batch parallel) so
    #    the chip-adaptive path is covered regardless of the local device.
    z3 = context_voted_forward(x, params_nz, batch_grid=True)
    z4 = context_voted_forward(x, params_nz, batch_grid=False)
    jax.block_until_ready((z3, z4))
    assert bool(jnp.allclose(z3, z4, atol=1e-5))

    print("KERNEL_OK")
</pallas_src>

<mosaic_0001>
module attributes {stable_mosaic.version = 11 : i64} {
  func.func @_nonlocal_kernel(%arg0: i32, %arg1: memref<1x4x256xf32, #tpu.memory_space<vmem>>, %arg2: memref<1x256x4xf32, #tpu.memory_space<vmem>>, %arg3: memref<2x4xf32, #tpu.memory_space<vmem>>, %arg4: memref<2x1xf32, #tpu.memory_space<vmem>>, %arg5: memref<4x4xf32, #tpu.memory_space<vmem>>, %arg6: memref<4x2xf32, #tpu.memory_space<vmem>>, %arg7: memref<4x1xf32, #tpu.memory_space<vmem>>, %arg8: memref<1x4x256xf32, #tpu.memory_space<vmem>>) attributes {dimension_semantics = [#tpu.dimension_semantics<parallel>], iteration_bounds = array<i64: 2>, scalar_prefetch = 0 : i64, scratch_operands = 0 : i64, tpu.core_type = #tpu.core_type<tc>, window_params = [{transform_indices = @transform_0, window_bounds = array<i64: 1, 4, 256>}, {transform_indices = @transform_1, window_bounds = array<i64: 1, 256, 4>}, {pipeline_mode = #tpu.pipeline_mode<synchronous>, transform_indices = @transform_2, window_bounds = array<i64: 2, 4>}, {pipeline_mode = #tpu.pipeline_mode<synchronous>, transform_indices = @transform_3, window_bounds = array<i64: 2, 1>}, {pipeline_mode = #tpu.pipeline_mode<synchronous>, transform_indices = @transform_4, window_bounds = array<i64: 4, 4>}, {pipeline_mode = #tpu.pipeline_mode<synchronous>, transform_indices = @transform_5, window_bounds = array<i64: 4, 2>}, {pipeline_mode = #tpu.pipeline_mode<synchronous>, transform_indices = @transform_6, window_bounds = array<i64: 4, 1>}, {transform_indices = @transform_7, window_bounds = array<i64: 1, 4, 256>}]} {
    %c0 = arith.constant 0 : index
    %c0_0 = arith.constant 0 : index
    %0 = vector.load %arg3[%c0, %c0_0] : memref<2x4xf32, #tpu.memory_space<vmem>>, vector<2x4xf32>
    %c0_1 = arith.constant 0 : index
    %c0_2 = arith.constant 0 : index
    %1 = vector.load %arg4[%c0_1, %c0_2] : memref<2x1xf32, #tpu.memory_space<vmem>>, vector<2x1xf32>
    %c0_3 = arith.constant 0 : index
    %c0_4 = arith.constant 0 : index
    %2 = vector.load %arg5[%c0_3, %c0_4] : memref<4x4xf32, #tpu.memory_space<vmem>>, vector<4x4xf32>
    %c0_5 = arith.constant 0 : index
    %c0_6 = arith.constant 0 : index
    %3 = vector.load %arg6[%c0_5, %c0_6] : memref<4x2xf32, #tpu.memory_space<vmem>>, vector<4x2xf32>
    %c0_7 = arith.constant 0 : index
    %c0_8 = arith.constant 0 : index
    %4 = vector.load %arg7[%c0_7, %c0_8] : memref<4x1xf32, #tpu.memory_space<vmem>>, vector<4x1xf32>
    %c0_9 = arith.constant 0 : index
    %c0_10 = arith.constant 0 : index
    %c0_11 = arith.constant 0 : index
    %5 = vector.load %arg1[%c0_9, %c0_10, %c0_11] : memref<1x4x256xf32, #tpu.memory_space<vmem>>, vector<1x4x256xf32>
    %6 = vector.shape_cast %5 : vector<1x4x256xf32> to vector<4x256xf32>
    %cst = arith.constant dense<0.000000e+00> : vector<2x256xf32>
    %7 = tpu.matmul %0, %6, %cst {dimension_numbers = #tpu.dot_dimension_numbers<[1], [0], [0], [1], [0, 0, 1, 1], [], []>} : vector<2x4xf32>, vector<4x256xf32>, vector<2x256xf32> -> vector<2x256xf32>
    %8 = vector.broadcast %1 : vector<2x1xf32> to vector<2x256xf32>
    %9 = arith.addf %7, %8 : vector<2x256xf32>
    %c0_12 = arith.constant 0 : index
    %c0_13 = arith.constant 0 : index
    %c0_14 = arith.constant 0 : index
    %10 = vector.load %arg2[%c0_12, %c0_13, %c0_14] : memref<1x256x4xf32, #tpu.memory_space<vmem>>, vector<1x256x4xf32>
    %11 = vector.shape_cast %10 : vector<1x256x4xf32> to vector<256x4xf32>
    %cst_15 = arith.constant dense<0.000000e+00> : vector<256x4xf32>
    %12 = tpu.matmul %11, %2, %cst_15 {dimension_numbers = #tpu.dot_dimension_numbers<[1], [0], [0], [1], [0, 0, 1, 1], [], []>} : vector<256x4xf32>, vector<4x4xf32>, vector<256x4xf32> -> vector<256x4xf32>
    %13 = vector.extract_strided_slice %12 {offsets = [0, 0], sizes = [32, 4], strides = [1, 1]} : vector<256x4xf32> to vector<32x4xf32>
    %14 = vector.extract_strided_slice %12 {offsets = [32, 0], sizes = [32, 4], strides = [1, 1]} : vector<256x4xf32> to vector<32x4xf32>
    %15 = arith.maximumf %13, %14 : vector<32x4xf32>
    %16 = vector.extract_strided_slice %12 {offsets = [64, 0], sizes = [32, 4], strides = [1, 1]} : vector<256x4xf32> to vector<32x4xf32>
    %17 = arith.maximumf %15, %16 : vector<32x4xf32>
    %18 = vector.extract_strided_slice %12 {offsets = [96, 0], sizes = [32, 4], strides = [1, 1]} : vector<256x4xf32> to vector<32x4xf32>
    %19 = arith.maximumf %17, %18 : vector<32x4xf32>
    %20 = vector.extract_strided_slice %12 {offsets = [128, 0], sizes = [32, 4], strides = [1, 1]} : vector<256x4xf32> to vector<32x4xf32>
    %21 = arith.maximumf %19, %20 : vector<32x4xf32>
    %22 = vector.extract_strided_slice %12 {offsets = [160, 0], sizes = [32, 4], strides = [1, 1]} : vector<256x4xf32> to vector<32x4xf32>
    %23 = arith.maximumf %21, %22 : vector<32x4xf32>
    %24 = vector.extract_strided_slice %12 {offsets = [192, 0], sizes = [32, 4], strides = [1, 1]} : vector<256x4xf32> to vector<32x4xf32>
    %25 = arith.maximumf %23, %24 : vector<32x4xf32>
    %26 = vector.extract_strided_slice %12 {offsets = [224, 0], sizes = [32, 4], strides = [1, 1]} : vector<256x4xf32> to vector<32x4xf32>
    %27 = arith.maximumf %25, %26 : vector<32x4xf32>
    %28 = vector.extract_strided_slice %27 {offsets = [0, 0], sizes = [32, 1], strides = [1, 1]} : vector<32x4xf32> to vector<32x1xf32>
    %29 = vector.extract_strided_slice %9 {offsets = [0, 0], sizes = [1, 256], strides = [1, 1]} : vector<2x256xf32> to vector<1x256xf32>
    %30 = vector.broadcast %28 : vector<32x1xf32> to vector<32x256xf32>
    %31 = vector.broadcast %29 : vector<1x256xf32> to vector<32x256xf32>
    %32 = arith.mulf %30, %31 : vector<32x256xf32>
    %33 = vector.extract_strided_slice %27 {offsets = [0, 1], sizes = [32, 1], strides = [1, 1]} : vector<32x4xf32> to vector<32x1xf32>
    %34 = vector.extract_strided_slice %9 {offsets = [1, 0], sizes = [1, 256], strides = [1, 1]} : vector<2x256xf32> to vector<1x256xf32>
    %35 = vector.broadcast %33 : vector<32x1xf32> to vector<32x256xf32>
    %36 = vector.broadcast %34 : vector<1x256xf32> to vector<32x256xf32>
    %37 = arith.mulf %35, %36 : vector<32x256xf32>
    %38 = arith.addf %32, %37 : vector<32x256xf32>
    %cst_16 = arith.constant dense<0xFF800000> : vector<256xf32>
    %39 = vector.multi_reduction <maximumf>, %38, %cst_16 [0] : vector<32x256xf32> to vector<256xf32>
    %40 = vector.shape_cast %39 : vector<256xf32> to vector<1x256xf32>
    %41 = vector.broadcast %40 : vector<1x256xf32> to vector<32x256xf32>
    %42 = arith.subf %38, %41 : vector<32x256xf32>
    %43 = math.exp %42 : vector<32x256xf32>
    %cst_17 = arith.constant dense<0.000000e+00> : vector<256xf32>
    %44 = vector.multi_reduction <add>, %43, %cst_17 [0] : vector<32x256xf32> to vector<256xf32>
    %45 = vector.shape_cast %44 : vector<256xf32> to vector<1x256xf32>
    %46 = tpu.reciprocal %45 : vector<1x256xf32> -> vector<1x256xf32>
    %47 = vector.broadcast %46 : vector<1x256xf32> to vector<32x256xf32>
    %48 = arith.mulf %43, %47 : vector<32x256xf32>
    %49 = vector.extract_strided_slice %3 {offsets = [0, 0], sizes = [4, 1], strides = [1, 1]} : vector<4x2xf32> to vector<4x1xf32>
    %50 = vector.extract_strided_slice %27 {offsets = [0, 2], sizes = [32, 1], strides = [1, 1]} : vector<32x4xf32> to vector<32x1xf32>
    %51 = vector.broadcast %50 : vector<32x1xf32> to vector<32x256xf32>
    %52 = arith.mulf %51, %48 : vector<32x256xf32>
    %cst_18 = arith.constant dense<0.000000e+00> : vector<256xf32>
    %53 = vector.multi_reduction <add>, %52, %cst_18 [0] : vector<32x256xf32> to vector<256xf32>
    %54 = vector.shape_cast %53 : vector<256xf32> to vector<1x256xf32>
    %55 = vector.broadcast %49 : vector<4x1xf32> to vector<4x256xf32>
    %56 = vector.broadcast %54 : vector<1x256xf32> to vector<4x256xf32>
    %57 = arith.mulf %55, %56 : vector<4x256xf32>
    %58 = vector.extract_strided_slice %3 {offsets = [0, 1], sizes = [4, 1], strides = [1, 1]} : vector<4x2xf32> to vector<4x1xf32>
    %59 = vector.extract_strided_slice %27 {offsets = [0, 3], sizes = [32, 1], strides = [1, 1]} : vector<32x4xf32> to vector<32x1xf32>
    %60 = vector.broadcast %59 : vector<32x1xf32> to vector<32x256xf32>
    %61 = arith.mulf %60, %48 : vector<32x256xf32>
    %cst_19 = arith.constant dense<0.000000e+00> : vector<256xf32>
    %62 = vector.multi_reduction <add>, %61, %cst_19 [0] : vector<32x256xf32> to vector<256xf32>
    %63 = vector.shape_cast %62 : vector<256xf32> to vector<1x256xf32>
    %64 = vector.broadcast %58 : vector<4x1xf32> to vector<4x256xf32>
    %65 = vector.broadcast %63 : vector<1x256xf32> to vector<4x256xf32>
    %66 = arith.mulf %64, %65 : vector<4x256xf32>
    %67 = arith.addf %57, %66 : vector<4x256xf32>
    %68 = vector.broadcast %4 : vector<4x1xf32> to vector<4x256xf32>
    %69 = arith.addf %67, %68 : vector<4x256xf32>
    %70 = arith.addf %69, %6 : vector<4x256xf32>
    %c0_20 = arith.constant 0 : index
    %c0_21 = arith.constant 0 : index
    %c0_22 = arith.constant 0 : index
    %71 = vector.load %arg8[%c0_20, %c0_21, %c0_22] : memref<1x4x256xf32, #tpu.memory_space<vmem>>, vector<1x4x256xf32>
    %72 = vector.shape_cast %71 : vector<1x4x256xf32> to vector<4x256xf32>
    %73 = vector.shape_cast %70 : vector<4x256xf32> to vector<1x4x256xf32>
    tpu.vector_store %arg8[%c0_20, %c0_21, %c0_22], %73 {strides = array<i32>} : memref<1x4x256xf32, #tpu.memory_space<vmem>>, vector<1x4x256xf32>,
    return
  }
  func.func @transform_0(%arg0: i32) -> (i32, i32, i32) {
    %c0_i32 = arith.constant 0 : i32
    %c0_i32_0 = arith.constant 0 : i32
    %c0_i32_1 = arith.constant 0 : i32
    return %arg0, %c0_i32, %c0_i32_0 : i32, i32, i32
  }
  func.func @transform_1(%arg0: i32) -> (i32, i32, i32) {
    %c0_i32 = arith.constant 0 : i32
    %c0_i32_0 = arith.constant 0 : i32
    %c0_i32_1 = arith.constant 0 : i32
    return %arg0, %c0_i32, %c0_i32_0 : i32, i32, i32
  }
  func.func @transform_2(%arg0: i32) -> (i32, i32) {
    %c0_i32 = arith.constant 0 : i32
    %c0_i32_0 = arith.constant 0 : i32
    %c0_i32_1 = arith.constant 0 : i32
    return %c0_i32, %c0_i32_0 : i32, i32
  }
  func.func @transform_3(%arg0: i32) -> (i32, i32) {
    %c0_i32 = arith.constant 0 : i32
    %c0_i32_0 = arith.constant 0 : i32
    %c0_i32_1 = arith.constant 0 : i32
    return %c0_i32, %c0_i32_0 : i32, i32
  }
  func.func @transform_4(%arg0: i32) -> (i32, i32) {
    %c0_i32 = arith.constant 0 : i32
    %c0_i32_0 = arith.constant 0 : i32
    %c0_i32_1 = arith.constant 0 : i32
    return %c0_i32, %c0_i32_0 : i32, i32
  }
  func.func @transform_5(%arg0: i32) -> (i32, i32) {
    %c0_i32 = arith.constant 0 : i32
    %c0_i32_0 = arith.constant 0 : i32
    %c0_i32_1 = arith.constant 0 : i32
    return %c0_i32, %c0_i32_0 : i32, i32
  }
  func.func @transform_6(%arg0: i32) -> (i32, i32) {
    %c0_i32 = arith.constant 0 : i32
    %c0_i32_0 = arith.constant 0 : i32
    %c0_i32_1 = arith.constant 0 : i32
    return %c0_i32, %c0_i32_0 : i32, i32
  }
  func.func @transform_7(%arg0: i32) -> (i32, i32, i32) {
    %c0_i32 = arith.constant 0 : i32
    %c0_i32_0 = arith.constant 0 : i32
    %c0_i32_1 = arith.constant 0 : i32
    return %arg0, %c0_i32, %c0_i32_0 : i32, i32, i32
  }
}

</mosaic_0001>

<llo_original>
// kernel: tpu_custom_call.1
$region0: #{tpu_custom_call.1}
  #allocation0 [shape = 'u32[]', space=smem, size = 0x4, offset = 0x4, fixed_abs, tag = 'smem constant byte address 0x4 - core index']
  #allocation1 [shape = 'u32[144,128]{1,0:T(1,128)}', space=vmem, size = 0x12000, scoped, tag = 'internal scratch']
  %s0 = inlined_call_operand.vmem [shape: f32[2,4,256], index: 0, kind: input, shape index: {}]
  %s1 = inlined_call_operand.vmem [shape: f32[2,256,4], index: 1, kind: input, shape index: {}]
  %s2 = inlined_call_operand.vmem [shape: f32[2,4], index: 2, kind: input, shape index: {}]
  %s3 = inlined_call_operand.vmem [shape: f32[2,1], index: 3, kind: input, shape index: {}]
  %s4 = inlined_call_operand.vmem [shape: f32[4,4], index: 4, kind: input, shape index: {}]
  %s5 = inlined_call_operand.vmem [shape: f32[4,2], index: 5, kind: input, shape index: {}]
  %s6 = inlined_call_operand.vmem [shape: f32[4,1], index: 6, kind: input, shape index: {}]
  %s7 = inlined_call_operand.hbm [shape: f32[2,4,256], index: 7, kind: output, shape index: {}]
  %s8 = sld [smem:[#allocation0]]
  $region61: #{tpu_custom_call.1} parent=0
    _
  %s10 = ssub.s32 1, %s8
  %s11 = scalar_select 0, %s10, %s8
  $region1: #{tpu_custom_call.1} parent=0
    #allocation2 [shape = 'u8[8192]{0}', space=vmem, size = 0x2000, scoped, tag = 'output window, operand 0']
    #allocation3 [shape = 's32[2]{0}', space=sflag, size = 0x8, scoped, tag = 'scoped memory for tpu_custom_call.1']
    %12 = vsyncpa [#allocation3], 0
    %s13 = scalar_lea.sflag [#allocation3], 1
    %14 = vsyncpa %s13, 0
    loop: start=0, step=1, limit=4
    $region2: #{tpu_custom_call.1} parent=1 // loop_pre_header
      _
    $region3: #{tpu_custom_call.1} parent=1 // loop_header
      %s16 = sphi 0, %s20
      %p17 = scmp.ge.s32.totalorder %s16, 4
      %s26 = sphi 0, %s28
      %s29 = sphi 0, %s26
      %s30 = sphi 0, %s29
      %s46 = sphi 0, %s30
      %s52 = sphi 0, %s54
      %s55 = sphi 0, %s52
      %s56 = sphi 0, %s55
      %s72 = sphi 0, %s56
      %s76 = sphi 0, %s76
      %s78 = sphi 0, %s76
      %s79 = sphi 0, %s78
      %s93 = sphi 0, %s79
      %s97 = sphi 0, %s97
      %s99 = sphi 0, %s97
      %s100 = sphi 0, %s99
      %s114 = sphi 0, %s100
      %s118 = sphi 0, %s118
      %s120 = sphi 0, %s118
      %s121 = sphi 0, %s120
      %s135 = sphi 0, %s121
      %s139 = sphi 0, %s139
      %s141 = sphi 0, %s139
      %s142 = sphi 0, %s141
      %s156 = sphi 0, %s142
      %s160 = sphi 0, %s160
      %s162 = sphi 0, %s160
      %s163 = sphi 0, %s162
      %s177 = sphi 0, %s163
      %s183 = sphi 0, %s185
      %s186 = sphi 0, %s183
      %s187 = sphi 0, %s186
      %s203 = sphi 0, %s187
    $region4: #{tpu_custom_call.1} parent=1 // loop_header_branch
      %19 = sbr.rel (%p17) target = $region8
    $region5: #{tpu_custom_call.1} parent=1 // loop_body
      %s21 = ssub.s32 %s16, 1
      %s22 = ssub.s32 %s16, 2
      %s23 = sadd.s32 %s16, 1
      %s24 = ssub.s32 %s16, %s23
      %p25 = scmp.eq.s32.totalorder %s24, 0
      %s27 = sadd.s32 %s26, 1
      %s28 = scalar_select %p25, %s26, %s27
      %p31 = pneg %p25
      %p32 = scmp.eq.s32.totalorder %s16, 1
      %p33 = por %p31, %p32
      %p34 = scmp.ne.s32.totalorder %s26, %s29
      %p35 = scmp.eq.s32.totalorder %s16, 0
      %p36 = por %p34, %p35
      %p37 = scmp.ne.s32.totalorder %s26, %s29
      %p38 = scmp.eq.s32.totalorder %s21, 1
      %p39 = por %p37, %p38
      %p40 = scmp.ne.s32.totalorder %s29, %s30
      %p41 = scmp.eq.s32.totalorder %s21, 0
      %p42 = por %p40, %p41
      %p43 = scmp.ne.s32.totalorder %s29, %s30
      %p44 = scmp.eq.s32.totalorder %s22, 1
      %p45 = por %p43, %p44
      %p47 = scmp.ne.s32.totalorder %s30, %s46
      %p48 = scmp.eq.s32.totalorder %s22, 0
      %p49 = por %p47, %p48
      %s50 = ssub.s32 %s16, %s23
      %p51 = scmp.eq.s32.totalorder %s50, 0
      %s53 = sadd.s32 %s52, 1
      %s54 = scalar_select %p51, %s52, %s53
      %p57 = pneg %p51
      %p58 = scmp.eq.s32.totalorder %s16, 1
      %p59 = por %p57, %p58
      %p60 = scmp.ne.s32.totalorder %s52, %s55
      %p61 = scmp.eq.s32.totalorder %s16, 0
      %p62 = por %p60, %p61
      %p63 = scmp.ne.s32.totalorder %s52, %s55
      %p64 = scmp.eq.s32.totalorder %s21, 1
      %p65 = por %p63, %p64
      %p66 = scmp.ne.s32.totalorder %s55, %s56
      %p67 = scmp.eq.s32.totalorder %s21, 0
      %p68 = por %p66, %p67
      %p69 = scmp.ne.s32.totalorder %s55, %s56
      %p70 = scmp.eq.s32.totalorder %s22, 1
      %p71 = por %p69, %p70
      %p73 = scmp.ne.s32.totalorder %s56, %s72
      %p74 = scmp.eq.s32.totalorder %s22, 0
      %p75 = por %p73, %p74
      %s77 = sadd.s32 %s76, 1
      %p80 = scmp.eq.s32.totalorder %s16, 1
      %p81 = scmp.ne.s32.totalorder %s76, %s78
      %p82 = scmp.eq.s32.totalorder %s16, 0
      %p83 = por %p81, %p82
      %p84 = scmp.ne.s32.totalorder %s76, %s78
      %p85 = scmp.eq.s32.totalorder %s21, 1
      %p86 = por %p84, %p85
      %p87 = scmp.ne.s32.totalorder %s78, %s79
      %p88 = scmp.eq.s32.totalorder %s21, 0
      %p89 = por %p87, %p88
      %p90 = scmp.ne.s32.totalorder %s78, %s79
      %p91 = scmp.eq.s32.totalorder %s22, 1
      %p92 = por %p90, %p91
      %p94 = scmp.ne.s32.totalorder %s79, %s93
      %p95 = scmp.eq.s32.totalorder %s22, 0
      %p96 = por %p94, %p95
      %s98 = sadd.s32 %s97, 1
      %p101 = scmp.eq.s32.totalorder %s16, 1
      %p102 = scmp.ne.s32.totalorder %s97, %s99
      %p103 = scmp.eq.s32.totalorder %s16, 0
      %p104 = por %p102, %p103
      %p105 = scmp.ne.s32.totalorder %s97, %s99
      %p106 = scmp.eq.s32.totalorder %s21, 1
      %p107 = por %p105, %p106
      %p108 = scmp.ne.s32.totalorder %s99, %s100
      %p109 = scmp.eq.s32.totalorder %s21, 0
      %p110 = por %p108, %p109
      %p111 = scmp.ne.s32.totalorder %s99, %s100
      %p112 = scmp.eq.s32.totalorder %s22, 1
      %p113 = por %p111, %p112
      %p115 = scmp.ne.s32.totalorder %s100, %s114
      %p116 = scmp.eq.s32.totalorder %s22, 0
      %p117 = por %p115, %p116
      %s119 = sadd.s32 %s118, 1
      %p122 = scmp.eq.s32.totalorder %s16, 1
      %p123 = scmp.ne.s32.totalorder %s118, %s120
      %p124 = scmp.eq.s32.totalorder %s16, 0
      %p125 = por %p123, %p124
      %p126 = scmp.ne.s32.totalorder %s118, %s120
      %p127 = scmp.eq.s32.totalorder %s21, 1
      %p128 = por %p126, %p127
      %p129 = scmp.ne.s32.totalorder %s120, %s121
      %p130 = scmp.eq.s32.totalorder %s21, 0
      %p131 = por %p129, %p130
      %p132 = scmp.ne.s32.totalorder %s120, %s121
      %p133 = scmp.eq.s32.totalorder %s22, 1
      %p134 = por %p132, %p133
      %p136 = scmp.ne.s32.totalorder %s121, %s135
      %p137 = scmp.eq.s32.totalorder %s22, 0
      %p138 = por %p136, %p137
      %s140 = sadd.s32 %s139, 1
      %p143 = scmp.eq.s32.totalorder %s16, 1
      %p144 = scmp.ne.s32.totalorder %s139, %s141
      %p145 = scmp.eq.s32.totalorder %s16, 0
      %p146 = por %p144, %p145
      %p147 = scmp.ne.s32.totalorder %s139, %s141
      %p148 = scmp.eq.s32.totalorder %s21, 1
      %p149 = por %p147, %p148
      %p150 = scmp.ne.s32.totalorder %s141, %s142
      %p151 = scmp.eq.s32.totalorder %s21, 0
      %p152 = por %p150, %p151
      %p153 = scmp.ne.s32.totalorder %s141, %s142
      %p154 = scmp.eq.s32.totalorder %s22, 1
      %p155 = por %p153, %p154
      %p157 = scmp.ne.s32.totalorder %s142, %s156
      %p158 = scmp.eq.s32.totalorder %s22, 0
      %p159 = por %p157, %p158
      %s161 = sadd.s32 %s160, 1
      %p164 = scmp.eq.s32.totalorder %s16, 1
      %p165 = scmp.ne.s32.totalorder %s160, %s162
      %p166 = scmp.eq.s32.totalorder %s16, 0
      %p167 = por %p165, %p166
      %p168 = scmp.ne.s32.totalorder %s160, %s162
      %p169 = scmp.eq.s32.totalorder %s21, 1
      %p170 = por %p168, %p169
      %p171 = scmp.ne.s32.totalorder %s162, %s163
      %p172 = scmp.eq.s32.totalorder %s21, 0
      %p173 = por %p171, %p172
      %p174 = scmp.ne.s32.totalorder %s162, %s163
      %p175 = scmp.eq.s32.totalorder %s22, 1
      %p176 = por %p174, %p175
      %p178 = scmp.ne.s32.totalorder %s163, %s177
      %p179 = scmp.eq.s32.totalorder %s22, 0
      %p180 = por %p178, %p179
      %s181 = ssub.s32 %s16, %s23
      %p182 = scmp.eq.s32.totalorder %s181, 0
      %s184 = sadd.s32 %s183, 1
      %s185 = scalar_select %p182, %s183, %s184
      %p188 = pneg %p182
      %p189 = scmp.eq.s32.totalorder %s16, 1
      %p190 = por %p188, %p189
      %p191 = scmp.ne.s32.totalorder %s183, %s186
      %p192 = scmp.eq.s32.totalorder %s16, 0
      %p193 = por %p191, %p192
      %p194 = scmp.ne.s32.totalorder %s183, %s186
      %p195 = scmp.eq.s32.totalorder %s21, 1
      %p196 = por %p194, %p195
      %p197 = scmp.ne.s32.totalorder %s186, %s187
      %p198 = scmp.eq.s32.totalorder %s21, 0
      %p199 = por %p197, %p198
      %p200 = scmp.ne.s32.totalorder %s186, %s187
      %p201 = scmp.eq.s32.totalorder %s22, 1
      %p202 = por %p200, %p201
      %p204 = scmp.ne.s32.totalorder %s187, %s203
      %p205 = scmp.eq.s32.totalorder %s22, 0
      %p206 = por %p204, %p205
      %p207 = scmp.le.s32.totalorder 1, %s16
      %p208 = scmp.lt.s32.totalorder %s16, 3
      %p209 = pnand %p207, %p208
      %p210 = pneg %p209
      // Predicated region
      $region9: #{tpu_custom_call.1} parent=5 // pred_check
        _
      $region10: #{tpu_custom_call.1} parent=5 // pred_check_branch
        %212 = sbr.rel (%p209) target = $region12
      $region11: #{tpu_custom_call.1} parent=5 // pred_region
        %s213 = ssub.s32 %s16, 1
        // Predicated region
        $region13: #{tpu_custom_call.1} parent=11 // pred_check
          %p214 = pneg %p89
        $region14: #{tpu_custom_call.1} parent=11 // pred_check_branch
          %216 = sbr.rel (%p214) target = $region16
        $region15: #{tpu_custom_call.1} parent=11 // pred_region
          _
        $region16: #{tpu_custom_call.1} parent=11 // pred_fallthru
          _
        // Predicated region
        $region17: #{tpu_custom_call.1} parent=11 // pred_check
          %p217 = pneg %p110
        $region18: #{tpu_custom_call.1} parent=11 // pred_check_branch
          %219 = sbr.rel (%p217) target = $region20
        $region19: #{tpu_custom_call.1} parent=11 // pred_region
          _
        $region20: #{tpu_custom_call.1} parent=11 // pred_fallthru
          _
        // Predicated region
        $region21: #{tpu_custom_call.1} parent=11 // pred_check
          %p220 = pneg %p131
        $region22: #{tpu_custom_call.1} parent=11 // pred_check_branch
          %222 = sbr.rel (%p220) target = $region24
        $region23: #{tpu_custom_call.1} parent=11 // pred_region
          _
        $region24: #{tpu_custom_call.1} parent=11 // pred_fallthru
          _
        // Predicated region
        $region25: #{tpu_custom_call.1} parent=11 // pred_check
          %p223 = pneg %p152
        $region26: #{tpu_custom_call.1} parent=11 // pred_check_branch
          %225 = sbr.rel (%p223) target = $region28
        $region27: #{tpu_custom_call.1} parent=11 // pred_region
          _
        $region28: #{tpu_custom_call.1} parent=11 // pred_fallthru
          _
        // Predicated region
        $region29: #{tpu_custom_call.1} parent=11 // pred_check
          %p226 = pneg %p173
        $region30: #{tpu_custom_call.1} parent=11 // pred_check_branch
          %228 = sbr.rel (%p226) target = $region32
        $region31: #{tpu_custom_call.1} parent=11 // pred_region
          _
        $region32: #{tpu_custom_call.1} parent=11 // pred_fallthru
          _
      $region12: #{tpu_custom_call.1} parent=5 // pred_fallthru
        _
      %p229 = scmp.lt.s32.totalorder %s16, 2
      // Predicated region
      $region33: #{tpu_custom_call.1} parent=5 // pred_check
        %p230 = pneg %p229
      $region34: #{tpu_custom_call.1} parent=5 // pred_check_branch
        %232 = sbr.rel (%p230) target = $region36
      $region35: #{tpu_custom_call.1} parent=5 // pred_region
        // Predicated region
        $region37: #{tpu_custom_call.1} parent=35 // pred_check
          %p233 = pneg %p36
        $region38: #{tpu_custom_call.1} parent=35 // pred_check_branch
          %235 = sbr.rel (%p233) target = $region40
        $region39: #{tpu_custom_call.1} parent=35 // pred_region
          %p236 = scmp.lt.s32.totalorder %s16, 1
          %s237 = scalar_select %p236, %s16, 1
          %s238 = smul.addr %s237, 2
          %s239 = smul.addr %s238, 4
          %s240 = scalar_lea.vmem %s0, %s239
        $region40: #{tpu_custom_call.1} parent=35 // pred_fallthru
          _
        // Predicated region
        $region41: #{tpu_custom_call.1} parent=35 // pred_check
          %p241 = pneg %p62
        $region42: #{tpu_custom_call.1} parent=35 // pred_check_branch
          %243 = sbr.rel (%p241) target = $region44
        $region43: #{tpu_custom_call.1} parent=35 // pred_region
          %p244 = scmp.lt.s32.totalorder %s16, 1
          %s245 = scalar_select %p244, %s16, 1
          %s246 = smul.addr %s245, 32
          %s247 = smul.addr %s246, 8
          %s248 = scalar_lea.vmem %s1, %s247
        $region44: #{tpu_custom_call.1} parent=35 // pred_fallthru
          _
      $region36: #{tpu_custom_call.1} parent=5 // pred_fallthru
        _
      %p249 = scmp.le.s32.totalorder 1, %s16
      %p250 = scmp.lt.s32.totalorder %s16, 3
      %p251 = pnand %p249, %p250
      %p252 = pneg %p251
      // Predicated region
      $region45: #{tpu_custom_call.1} parent=5 // pred_check
        _
      $region46: #{tpu_custom_call.1} parent=5 // pred_check_branch
        %254 = sbr.rel (%p251) target = $region48
      $region47: #{tpu_custom_call.1} parent=5 // pred_region
        %s255 = ssub.s32 %s16, 1
        %p256 = scmp.lt.s32.totalorder %s21, 1
        %s257 = scalar_select %p256, %s21, 1
        %s258 = smul.addr %s257, 2
        %s259 = smul.addr %s258, 4
        %s260 = scalar_lea.vmem %s0, %s259
        %p261 = pneg %p42
        %p262 = pneg %p39
        %p263 = scmp.lt.s32.totalorder %s21, 1
        %s264 = scalar_select %p263, %s21, 1
        %s265 = smul.addr %s264, 32
        %s266 = smul.addr %s265, 8
        %s267 = scalar_lea.vmem %s1, %s266
        %p268 = pneg %p68
        %p269 = pneg %p65
        %p270 = pneg %p89
        %p271 = pneg %p86
        %p272 = pneg %p110
        %p273 = pneg %p107
        %p274 = pneg %p131
        %p275 = pneg %p128
        %p276 = pneg %p152
        %p277 = pneg %p149
        %p278 = pneg %p173
        %p279 = pneg %p170
        %p280 = pneg %p199
        %p281 = pneg %p196
        %s282 = sand.u32 %s186, 1
        %s283 = scalar_lea.sflag [#allocation3], %s282
        %s284 = sand.u32 %s186, 1
        %s285 = smul.addr %s284, 8
        %s286 = scalar_lea.vmem [#allocation2], %s285
        %p287 = scmp.lt.s32.totalorder %s21, 1
        %s288 = scalar_select %p287, %s21, 1
        %s289 = smul.addr %s288, 2
        %s290 = smul.addr %s289, 4
        %s291 = scalar_lea.vmem %s0, %s290
        %p292 = scmp.lt.s32.totalorder %s21, 1
        %s293 = scalar_select %p292, %s21, 1
        %s294 = smul.addr %s293, 32
        %s295 = smul.addr %s294, 8
        %s296 = scalar_lea.vmem %s1, %s295
        %v297 = vld [vmem:[%s2] sm:$0x3]
        %v298 = vld [vmem:[%s3] sm:$0x3]
        %v299 = vld [vmem:[%s4] sm:$0xf]
        %v300 = vld [vmem:[%s5] sm:$0xf]
        %v301 = vld [vmem:[%s6] sm:$0xf]
        %v302 = vld [vmem:[%s291] sm:$0xff]
        %304 = vset.pattern.permute.xlu0 0
        %305 = vperm.xlu0 %304, %v298
        %v306 = vpop.permute.xlu0 %305
        %v309 = vcombine.high %v302, %v302
        %vm310 = vcmask 31744
        %v312 = vsel %vm310, %v297, 0
        %vm314 = vcmask 1043456
        %v315 = vsel %vm314, %v302, 0
        %v317 = vsel %vm314, %v309, 0
        %319 = vmatprep.subr.mxu0 %v317
        %320 = vmatpush1.msra.mxu0 %v315
        %321 = vmatprep.subr.mxu0 0.0
        %322 = vmatpush1.msra.mxu0 0.0
        %323 = vmatprep.subr.mxu0 0.0
        %324 = vmatpush1.msra.mxu0 0.0
        %325 = vmatprep.subr.mxu0 0.0
        %326 = vmatpush1.msra.mxu0 0.0
        %327 = vmatprep.subr.mxu0 0.0
        %328 = vmatpush1.msra.mxu0 0.0
        %329 = vmatprep.subr.mxu0 0.0
        %330 = vmatpush1.msra.mxu0 0.0
        %331 = vmatprep.subr.mxu0 0.0
        %332 = vmatpush1.msra.mxu0 0.0
        %333 = vmatprep.subr.mxu0 0.0
        %334 = vmatpush1.msra.mxu0 0.0
        %335 = vmatprep.subr.mxu0 0.0
        %336 = vmatpush1.msra.mxu0 0.0
        %337 = vmatprep.subr.mxu0 0.0
        %338 = vmatpush1.msra.mxu0 0.0
        %339 = vmatprep.subr.mxu0 0.0
        %340 = vmatpush1.msra.mxu0 0.0
        %341 = vmatprep.subr.mxu0 0.0
        %342 = vmatpush1.msra.mxu0 0.0
        %343 = vmatprep.subr.mxu0 0.0
        %344 = vmatpush1.msra.mxu0 0.0
        %345 = vmatprep.subr.mxu0 0.0
        %346 = vmatpush1.msra.mxu0 0.0
        %347 = vmatprep.subr.mxu0 0.0
        %348 = vmatpush1.msra.mxu0 0.0
        %349 = vmatprep.subr.mxu0 0.0
        %350 = vmatpush1.msra.mxu0 0.0
        %351 = vmatprep.subr.mxu0 0.0
        %352 = vmatpush1.msra.mxu0 0.0
        %353 = vmatprep.subr.mxu0 0.0
        %354 = vmatpush1.msra.mxu0 0.0
        %355 = vmatprep.subr.mxu0 0.0
        %356 = vmatpush1.msra.mxu0 0.0
        %357 = vmatprep.subr.mxu0 0.0
        %358 = vmatpush1.msra.mxu0 0.0
        %359 = vmatprep.subr.mxu0 0.0
        %360 = vmatpush1.msra.mxu0 0.0
        %361 = vmatprep.subr.mxu0 0.0
        %362 = vmatpush1.msra.mxu0 0.0
        %363 = vmatprep.subr.mxu0 0.0
        %364 = vmatpush1.msra.mxu0 0.0
        %365 = vmatprep.subr.mxu0 0.0
        %366 = vmatpush1.msra.mxu0 0.0
        %367 = vmatprep.subr.mxu0 0.0
        %368 = vmatpush1.msra.mxu0 0.0
        %369 = vmatprep.subr.mxu0 0.0
        %370 = vmatpush1.msra.mxu0 0.0
        %371 = vmatprep.subr.mxu0 0.0
        %372 = vmatpush1.msra.mxu0 0.0
        %373 = vmatprep.subr.mxu0 0.0
        %374 = vmatpush1.msra.mxu0 0.0
        %375 = vmatprep.subr.mxu0 0.0
        %376 = vmatpush1.msra.mxu0 0.0
        %377 = vmatprep.subr.mxu0 0.0
        %378 = vmatpush1.msra.mxu0 0.0
        %379 = vmatprep.subr.mxu0 0.0
        %380 = vmatpush1.msra.mxu0 0.0
        %381 = vmatprep.subr.mxu0 0.0
        %382 = vmatpush1.msra.mxu0 0.0
        %383 = vmatprep.mubr.f32.mxu0 0.0
        %384 = vmatmul.mubr.f32.gmra.mrb[0].mxu0 %v312
        %v385 = vpop.f32.mrb[0].mxu0
        %v386 = vadd.f32 %v306, %v385
        %v387 = vpop.f32.mrb[0].mxu0
        %v388 = vadd.f32 %v306, %v387
        %389 = vdwg.mxu0
        %v390 = vld [vmem:[%s296] sm:$0xff]
        %v391 = vld [vmem:[%s296 + $0x8] sm:$0xff]
        %v392 = vld [vmem:[%s296 + $0x10] sm:$0xff]
        %v393 = vld [vmem:[%s296 + $0x18] sm:$0xff]
        %v394 = vld [vmem:[%s296 + $0x20] sm:$0xff]
        %v395 = vld [vmem:[%s296 + $0x28] sm:$0xff]
        %v396 = vld [vmem:[%s296 + $0x30] sm:$0xff]
        %v397 = vld [vmem:[%s296 + $0x38] sm:$0xff]
        %v398 = vld [vmem:[%s296 + $0x40] sm:$0xff]
        %v399 = vld [vmem:[%s296 + $0x48] sm:$0xff]
        %v400 = vld [vmem:[%s296 + $0x50] sm:$0xff]
        %v401 = vld [vmem:[%s296 + $0x58] sm:$0xff]
        %v402 = vld [vmem:[%s296 + $0x60] sm:$0xff]
        %v403 = vld [vmem:[%s296 + $0x68] sm:$0xff]
        %v404 = vld [vmem:[%s296 + $0x70] sm:$0xff]
        %v405 = vld [vmem:[%s296 + $0x78] sm:$0xff]
        %v406 = vld [vmem:[%s296 + $0x80] sm:$0xff]
        %v407 = vld [vmem:[%s296 + $0x88] sm:$0xff]
        %v408 = vld [vmem:[%s296 + $0x90] sm:$0xff]
        %v409 = vld [vmem:[%s296 + $0x98] sm:$0xff]
        %v410 = vld [vmem:[%s296 + $0xa0] sm:$0xff]
        %v411 = vld [vmem:[%s296 + $0xa8] sm:$0xff]
        %v412 = vld [vmem:[%s296 + $0xb0] sm:$0xff]
        %v413 = vld [vmem:[%s296 + $0xb8] sm:$0xff]
        %v414 = vld [vmem:[%s296 + $0xc0] sm:$0xff]
        %v415 = vld [vmem:[%s296 + $0xc8] sm:$0xff]
        %v416 = vld [vmem:[%s296 + $0xd0] sm:$0xff]
        %v417 = vld [vmem:[%s296 + $0xd8] sm:$0xff]
        %v418 = vld [vmem:[%s296 + $0xe0] sm:$0xff]
        %v419 = vld [vmem:[%s296 + $0xe8] sm:$0xff]
        %v420 = vld [vmem:[%s296 + $0xf0] sm:$0xff]
        %v421 = vld [vmem:[%s296 + $0xf8] sm:$0xff]
        %v423 = vsel %vm310, %v390, 0
        %v426 = vsel %vm310, %v391, 0
        %v429 = vsel %vm310, %v392, 0
        %v432 = vsel %vm310, %v393, 0
        %v435 = vsel %vm310, %v394, 0
        %v438 = vsel %vm310, %v395, 0
        %v441 = vsel %vm310, %v396, 0
        %v444 = vsel %vm310, %v397, 0
        %v447 = vsel %vm310, %v398, 0
        %v450 = vsel %vm310, %v399, 0
        %v453 = vsel %vm310, %v400, 0
        %v456 = vsel %vm310, %v401, 0
        %v459 = vsel %vm310, %v402, 0
        %v462 = vsel %vm310, %v403, 0
        %v465 = vsel %vm310, %v404, 0
        %v468 = vsel %vm310, %v405, 0
        %v471 = vsel %vm310, %v406, 0
        %v474 = vsel %vm310, %v407, 0
        %v477 = vsel %vm310, %v408, 0
        %v480 = vsel %vm310, %v409, 0
        %v483 = vsel %vm310, %v410, 0
        %v486 = vsel %vm310, %v411, 0
        %v489 = vsel %vm310, %v412, 0
        %v492 = vsel %vm310, %v413, 0
        %v495 = vsel %vm310, %v414, 0
        %v498 = vsel %vm310, %v415, 0
        %v501 = vsel %vm310, %v416, 0
        %v504 = vsel %vm310, %v417, 0
        %v507 = vsel %vm310, %v418, 0
        %v510 = vsel %vm310, %v419, 0
        %v513 = vsel %vm310, %v420, 0
        %v516 = vsel %vm310, %v421, 0
        %v519 = vsel %vm314, %v299, 0
        %521 = vmatprep.subr.mxu0 0.0
        %522 = vmatpush1.msra.mxu0 %v519
        %523 = vmatprep.subr.mxu0 0.0
        %524 = vmatpush1.msra.mxu0 0.0
        %525 = vmatprep.subr.mxu0 0.0
        %526 = vmatpush1.msra.mxu0 0.0
        %527 = vmatprep.subr.mxu0 0.0
        %528 = vmatpush1.msra.mxu0 0.0
        %529 = vmatprep.subr.mxu0 0.0
        %530 = vmatpush1.msra.mxu0 0.0
        %531 = vmatprep.subr.mxu0 0.0
        %532 = vmatpush1.msra.mxu0 0.0
        %533 = vmatprep.subr.mxu0 0.0
        %534 = vmatpush1.msra.mxu0 0.0
        %535 = vmatprep.subr.mxu0 0.0
        %536 = vmatpush1.msra.mxu0 0.0
        %537 = vmatprep.subr.mxu0 0.0
        %538 = vmatpush1.msra.mxu0 0.0
        %539 = vmatprep.subr.mxu0 0.0
        %540 = vmatpush1.msra.mxu0 0.0
        %541 = vmatprep.subr.mxu0 0.0
        %542 = vmatpush1.msra.mxu0 0.0
        %543 = vmatprep.subr.mxu0 0.0
        %544 = vmatpush1.msra.mxu0 0.0
        %545 = vmatprep.subr.mxu0 0.0
        %546 = vmatpush1.msra.mxu0 0.0
        %547 = vmatprep.subr.mxu0 0.0
        %548 = vmatpush1.msra.mxu0 0.0
        %549 = vmatprep.subr.mxu0 0.0
        %550 = vmatpush1.msra.mxu0 0.0
        %551 = vmatprep.subr.mxu0 0.0
        %552 = vmatpush1.msra.mxu0 0.0
        %553 = vmatprep.subr.mxu0 0.0
        %554 = vmatpush1.msra.mxu0 0.0
        %555 = vmatprep.subr.mxu0 0.0
        %556 = vmatpush1.msra.mxu0 0.0
        %557 = vmatprep.subr.mxu0 0.0
        %558 = vmatpush1.msra.mxu0 0.0
        %559 = vmatprep.subr.mxu0 0.0
        %560 = vmatpush1.msra.mxu0 0.0
        %561 = vmatprep.subr.mxu0 0.0
        %562 = vmatpush1.msra.mxu0 0.0
        %563 = vmatprep.subr.mxu0 0.0
        %564 = vmatpush1.msra.mxu0 0.0
        %565 = vmatprep.subr.mxu0 0.0
        %566 = vmatpush1.msra.mxu0 0.0
        %567 = vmatprep.subr.mxu0 0.0
        %568 = vmatpush1.msra.mxu0 0.0
        %569 = vmatprep.subr.mxu0 0.0
        %570 = vmatpush1.msra.mxu0 0.0
        %571 = vmatprep.subr.mxu0 0.0
        %572 = vmatpush1.msra.mxu0 0.0
        %573 = vmatprep.subr.mxu0 0.0
        %574 = vmatpush1.msra.mxu0 0.0
        %575 = vmatprep.subr.mxu0 0.0
        %576 = vmatpush1.msra.mxu0 0.0
        %577 = vmatprep.subr.mxu0 0.0
        %578 = vmatpush1.msra.mxu0 0.0
        %579 = vmatprep.subr.mxu0 0.0
        %580 = vmatpush1.msra.mxu0 0.0
        %581 = vmatprep.subr.mxu0 0.0
        %582 = vmatpush1.msra.mxu0 0.0
        %583 = vmatprep.subr.mxu0 0.0
        %584 = vmatpush1.msra.mxu0 0.0
        %585 = vmatprep.mubr.f32.mxu0 0.0
        %586 = vmatmul.mubr.f32.gmra.mrb[0].mxu0 %v423
        %v587 = vpop.f32.mrb[0].mxu0
        %v588 = vadd.f32 0.0, %v587
        %v589 = vpop.f32.mrb[0].mxu0
        %590 = vmatprep.mubr.f32.mxu0 0.0
        %591 = vmatmul.mubr.f32.gmra.mrb[0].mxu0 %v426
        %v592 = vpop.f32.mrb[0].mxu0
        %v593 = vadd.f32 0.0, %v592
        %v594 = vpop.f32.mrb[0].mxu0
        %595 = vmatprep.mubr.f32.mxu0 0.0
        %596 = vmatmul.mubr.f32.gmra.mrb[0].mxu0 %v429
        %v597 = vpop.f32.mrb[0].mxu0
        %v598 = vadd.f32 0.0, %v597
        %v599 = vpop.f32.mrb[0].mxu0
        %600 = vmatprep.mubr.f32.mxu0 0.0
        %601 = vmatmul.mubr.f32.gmra.mrb[0].mxu0 %v432
        %v602 = vpop.f32.mrb[0].mxu0
        %v603 = vadd.f32 0.0, %v602
        %v604 = vpop.f32.mrb[0].mxu0
        %605 = vmatprep.mubr.f32.mxu0 0.0
        %606 = vmatmul.mubr.f32.gmra.mrb[0].mxu0 %v435
        %v607 = vpop.f32.mrb[0].mxu0
        %v608 = vadd.f32 0.0, %v607
        %v609 = vpop.f32.mrb[0].mxu0
        %610 = vmatprep.mubr.f32.mxu0 0.0
        %611 = vmatmul.mubr.f32.gmra.mrb[0].mxu0 %v438
        %v612 = vpop.f32.mrb[0].mxu0
        %v613 = vadd.f32 0.0, %v612
        %v614 = vpop.f32.mrb[0].mxu0
        %615 = vmatprep.mubr.f32.mxu0 0.0
        %616 = vmatmul.mubr.f32.gmra.mrb[0].mxu0 %v441
        %v617 = vpop.f32.mrb[0].mxu0
        %v618 = vadd.f32 0.0, %v617
        %v619 = vpop.f32.mrb[0].mxu0
        %620 = vmatprep.mubr.f32.mxu0 0.0
        %621 = vmatmul.mubr.f32.gmra.mrb[0].mxu0 %v444
        %v622 = vpop.f32.mrb[0].mxu0
        %v623 = vadd.f32 0.0, %v622
        %v624 = vpop.f32.mrb[0].mxu0
        %625 = vmatprep.mubr.f32.mxu0 0.0
        %626 = vmatmul.mubr.f32.gmra.mrb[0].mxu0 %v447
        %v627 = vpop.f32.mrb[0].mxu0
        %v628 = vadd.f32 0.0, %v627
        %v629 = vpop.f32.mrb[0].mxu0
        %630 = vmatprep.mubr.f32.mxu0 0.0
        %631 = vmatmul.mubr.f32.gmra.mrb[0].mxu0 %v450
        %v632 = vpop.f32.mrb[0].mxu0
        %v633 = vadd.f32 0.0, %v632
        %v634 = vpop.f32.mrb[0].mxu0
        %635 = vmatprep.mubr.f32.mxu0 0.0
        %636 = vmatmul.mubr.f32.gmra.mrb[0].mxu0 %v453
        %v637 = vpop.f32.mrb[0].mxu0
        %v638 = vadd.f32 0.0, %v637
        %v639 = vpop.f32.mrb[0].mxu0
        %640 = vmatprep.mubr.f32.mxu0 0.0
        %641 = vmatmul.mubr.f32.gmra.mrb[0].mxu0 %v456
        %v642 = vpop.f32.mrb[0].mxu0
        %v643 = vadd.f32 0.0, %v642
        %v644 = vpop.f32.mrb[0].mxu0
        %645 = vmatprep.mubr.f32.mxu0 0.0
        %646 = vmatmul.mubr.f32.gmra.mrb[0].mxu0 %v459
        %v647 = vpop.f32.mrb[0].mxu0
        %v648 = vadd.f32 0.0, %v647
        %v649 = vpop.f32.mrb[0].mxu0
        %650 = vmatprep.mubr.f32.mxu0 0.0
        %651 = vmatmul.mubr.f32.gmra.mrb[0].mxu0 %v462
        %v652 = vpop.f32.mrb[0].mxu0
        %v653 = vadd.f32 0.0, %v652
        %v654 = vpop.f32.mrb[0].mxu0
        %655 = vmatprep.mubr.f32.mxu0 0.0
        %656 = vmatmul.mubr.f32.gmra.mrb[0].mxu0 %v465
        %v657 = vpop.f32.mrb[0].mxu0
        %v658 = vadd.f32 0.0, %v657
        %v659 = vpop.f32.mrb[0].mxu0
        %660 = vmatprep.mubr.f32.mxu0 0.0
        %661 = vmatmul.mubr.f32.gmra.mrb[0].mxu0 %v468
        %v662 = vpop.f32.mrb[0].mxu0
        %v663 = vadd.f32 0.0, %v662
        %v664 = vpop.f32.mrb[0].mxu0
        %665 = vmatprep.mubr.f32.mxu0 0.0
        %666 = vmatmul.mubr.f32.gmra.mrb[0].mxu0 %v471
        %v667 = vpop.f32.mrb[0].mxu0
        %v668 = vadd.f32 0.0, %v667
        %v669 = vpop.f32.mrb[0].mxu0
        %670 = vmatprep.mubr.f32.mxu0 0.0
        %671 = vmatmul.mubr.f32.gmra.mrb[0].mxu0 %v474
        %v672 = vpop.f32.mrb[0].mxu0
        %v673 = vadd.f32 0.0, %v672
        %v674 = vpop.f32.mrb[0].mxu0
        %675 = vmatprep.mubr.f32.mxu0 0.0
        %676 = vmatmul.mubr.f32.gmra.mrb[0].mxu0 %v477
        %v677 = vpop.f32.mrb[0].mxu0
        %v678 = vadd.f32 0.0, %v677
        %v679 = vpop.f32.mrb[0].mxu0
        %680 = vmatprep.mubr.f32.mxu0 0.0
        %681 = vmatmul.mubr.f32.gmra.mrb[0].mxu0 %v480
        %v682 = vpop.f32.mrb[0].mxu0
        %v683 = vadd.f32 0.0, %v682
        %v684 = vpop.f32.mrb[0].mxu0
        %685 = vmatprep.mubr.f32.mxu0 0.0
        %686 = vmatmul.mubr.f32.gmra.mrb[0].mxu0 %v483
        %v687 = vpop.f32.mrb[0].mxu0
        %v688 = vadd.f32 0.0, %v687
        %v689 = vpop.f32.mrb[0].mxu0
        %690 = vmatprep.mubr.f32.mxu0 0.0
        %691 = vmatmul.mubr.f32.gmra.mrb[0].mxu0 %v486
        %v692 = vpop.f32.mrb[0].mxu0
        %v693 = vadd.f32 0.0, %v692
        %v694 = vpop.f32.mrb[0].mxu0
        %695 = vmatprep.mubr.f32.mxu0 0.0
        %696 = vmatmul.mubr.f32.gmra.mrb[0].mxu0 %v489
        %v697 = vpop.f32.mrb[0].mxu0
        %v698 = vadd.f32 0.0, %v697
        %v699 = vpop.f32.mrb[0].mxu0
        %700 = vmatprep.mubr.f32.mxu0 0.0
        %701 = vmatmul.mubr.f32.gmra.mrb[0].mxu0 %v492
        %v702 = vpop.f32.mrb[0].mxu0
        %v703 = vadd.f32 0.0, %v702
        %v704 = vpop.f32.mrb[0].mxu0
        %705 = vmatprep.mubr.f32.mxu0 0.0
        %706 = vmatmul.mubr.f32.gmra.mrb[0].mxu0 %v495
        %v707 = vpop.f32.mrb[0].mxu0
        %v708 = vadd.f32 0.0, %v707
        %v709 = vpop.f32.mrb[0].mxu0
        %710 = vmatprep.mubr.f32.mxu0 0.0
        %711 = vmatmul.mubr.f32.gmra.mrb[0].mxu0 %v498
        %v712 = vpop.f32.mrb[0].mxu0
        %v713 = vadd.f32 0.0, %v712
        %v714 = vpop.f32.mrb[0].mxu0
        %715 = vmatprep.mubr.f32.mxu0 0.0
        %716 = vmatmul.mubr.f32.gmra.mrb[0].mxu0 %v501
        %v717 = vpop.f32.mrb[0].mxu0
        %v718 = vadd.f32 0.0, %v717
        %v719 = vpop.f32.mrb[0].mxu0
        %720 = vmatprep.mubr.f32.mxu0 0.0
        %721 = vmatmul.mubr.f32.gmra.mrb[0].mxu0 %v504
        %v722 = vpop.f32.mrb[0].mxu0
        %v723 = vadd.f32 0.0, %v722
        %v724 = vpop.f32.mrb[0].mxu0
        %725 = vmatprep.mubr.f32.mxu0 0.0
        %726 = vmatmul.mubr.f32.gmra.mrb[0].mxu0 %v507
        %v727 = vpop.f32.mrb[0].mxu0
        %v728 = vadd.f32 0.0, %v727
        %v729 = vpop.f32.mrb[0].mxu0
        %730 = vmatprep.mubr.f32.mxu0 0.0
        %731 = vmatmul.mubr.f32.gmra.mrb[0].mxu0 %v510
        %v732 = vpop.f32.mrb[0].mxu0
        %v733 = vadd.f32 0.0, %v732
        %v734 = vpop.f32.mrb[0].mxu0
        %735 = vmatprep.mubr.f32.mxu0 0.0
        %736 = vmatmul.mubr.f32.gmra.mrb[0].mxu0 %v513
        %v737 = vpop.f32.mrb[0].mxu0
        %v738 = vadd.f32 0.0, %v737
        %v739 = vpop.f32.mrb[0].mxu0
        %740 = vmatprep.mubr.f32.mxu0 0.0
        %741 = vmatmul.mubr.f32.gmra.mrb[0].mxu0 %v516
        %v742 = vpop.f32.mrb[0].mxu0
        %v743 = vadd.f32 0.0, %v742
        %v744 = vpop.f32.mrb[0].mxu0
        %745 = vdwg.mxu0
        %v746 = vmax.f32 %v588, %v608
        %v747 = vmax.f32 %v593, %v613
        %v748 = vmax.f32 %v598, %v618
        %v749 = vmax.f32 %v603, %v623
        %v750 = vmax.f32 %v746, %v628
        %v751 = vmax.f32 %v747, %v633
        %v752 = vmax.f32 %v748, %v638
        %v753 = vmax.f32 %v749, %v643
        %v754 = vmax.f32 %v750, %v648
        %v755 = vmax.f32 %v751, %v653
        %v756 = vmax.f32 %v752, %v658
        %v757 = vmax.f32 %v753, %v663
        %v758 = vmax.f32 %v754, %v668
        %v759 = vmax.f32 %v755, %v673
        %v760 = vmax.f32 %v756, %v678
        %v761 = vmax.f32 %v757, %v683
        %v762 = vmax.f32 %v758, %v688
        %v763 = vmax.f32 %v759, %v693
        %v764 = vmax.f32 %v760, %v698
        %v765 = vmax.f32 %v761, %v703
        %v766 = vmax.f32 %v762, %v708
        %v767 = vmax.f32 %v763, %v713
        %v768 = vmax.f32 %v764, %v718
        %v769 = vmax.f32 %v765, %v723
        %v770 = vmax.f32 %v766, %v728
        %v771 = vmax.f32 %v767, %v733
        %v772 = vmax.f32 %v768, %v738
        %v773 = vmax.f32 %v769, %v743
        %775 = vset.pattern.permute.xlu0 0
        %776 = vperm.xlu0 %775, %v770
        %v777 = vpop.permute.xlu0 %776
        %780 = vset.pattern.permute.xlu0 0
        %781 = vperm.xlu0 %780, %v771
        %v782 = vpop.permute.xlu0 %781
        %785 = vset.pattern.permute.xlu0 0
        %786 = vperm.xlu0 %785, %v772
        %v787 = vpop.permute.xlu0 %786
        %790 = vset.pattern.permute.xlu0 0
        %791 = vperm.xlu0 %790, %v773
        %v792 = vpop.permute.xlu0 %791
        %v794 = vlaneseq
        %v795 = vshrl.u32 %v794, 7
        %v796 = vsub.s32 0, %v795
        %v797 = vrot.slane %v386, %v796
        %v798 = vlaneseq
        %v799 = vshrl.u32 %v798, 7
        %v800 = vsub.s32 0, %v799
        %v801 = vrot.slane %v388, %v800
        %v802 = vmul.f32 %v777, %v797
        %v803 = vmul.f32 %v777, %v801
        %v804 = vmul.f32 %v782, %v797
        %v805 = vmul.f32 %v782, %v801
        %v806 = vmul.f32 %v787, %v797
        %v807 = vmul.f32 %v787, %v801
        %v808 = vmul.f32 %v792, %v797
        %v809 = vmul.f32 %v792, %v801
        %810 = vset.pattern.permute.xlu0 1
        %811 = vperm.xlu0 %810, %v770
        %v812 = vpop.permute.xlu0 %811
        %814 = vset.pattern.permute.xlu0 1
        %815 = vperm.xlu0 %814, %v771
        %v816 = vpop.permute.xlu0 %815
        %818 = vset.pattern.permute.xlu0 1
        %819 = vperm.xlu0 %818, %v772
        %v820 = vpop.permute.xlu0 %819
        %822 = vset.pattern.permute.xlu0 1
        %823 = vperm.xlu0 %822, %v773
        %v824 = vpop.permute.xlu0 %823
        %v826 = vlaneseq
        %v827 = vshrl.u32 %v826, 7
        %v828 = vsub.s32 1, %v827
        %v829 = vrot.slane %v386, %v828
        %v830 = vlaneseq
        %v831 = vshrl.u32 %v830, 7
        %v832 = vsub.s32 1, %v831
        %v833 = vrot.slane %v388, %v832
        %v834 = vmul.f32 %v812, %v829
        %v835 = vmul.f32 %v812, %v833
        %v836 = vmul.f32 %v816, %v829
        %v837 = vmul.f32 %v816, %v833
        %v838 = vmul.f32 %v820, %v829
        %v839 = vmul.f32 %v820, %v833
        %v840 = vmul.f32 %v824, %v829
        %v841 = vmul.f32 %v824, %v833
        %v842 = vadd.f32 %v802, %v834
        %v843 = vadd.f32 %v803, %v835
        %v844 = vadd.f32 %v804, %v836
        %v845 = vadd.f32 %v805, %v837
        %v846 = vadd.f32 %v806, %v838
        %v847 = vadd.f32 %v807, %v839
        %v848 = vadd.f32 %v808, %v840
        %v849 = vadd.f32 %v809, %v841
        %v850 = vmax.f32 %v842, %v846
        %v851 = vmax.f32 %v844, %v848
        %v852 = vmax.f32 %v850, %v851
        %v853 = vrot.slane %v852, 4
        %v854 = vmax.f32 %v852, %v853
        %v855 = vrot.slane %v854, 2
        %v856 = vmax.f32 %v854, %v855
        %v857 = vrot.slane %v856, 1
        %v858 = vmax.f32 %v856, %v857
        %v859 = vmax.f32 %v843, %v847
        %v860 = vmax.f32 %v845, %v849
        %v861 = vmax.f32 %v859, %v860
        %v862 = vrot.slane %v861, 4
        %v863 = vmax.f32 %v861, %v862
        %v864 = vrot.slane %v863, 2
        %v865 = vmax.f32 %v863, %v864
        %v866 = vrot.slane %v865, 1
        %v867 = vmax.f32 %v865, %v866
        %v868 = vsub.f32 %v842, %v858
        %v869 = vsub.f32 %v843, %v867
        %v870 = vsub.f32 %v844, %v858
        %v871 = vsub.f32 %v845, %v867
        %v872 = vsub.f32 %v846, %v858
        %v873 = vsub.f32 %v847, %v867
        %v874 = vsub.f32 %v848, %v858
        %v875 = vsub.f32 %v849, %v867
        %v876 = vmul.f32 %v868, 1.442695
        %v877 = vpow.pop %v876
        %v878 = vmul.f32 %v869, 1.442695
        %v879 = vpow.pop %v878
        %v880 = vmul.f32 %v870, 1.442695
        %v881 = vpow.pop %v880
        %v882 = vmul.f32 %v871, 1.442695
        %v883 = vpow.pop %v882
        %v884 = vmul.f32 %v872, 1.442695
        %v885 = vpow.pop %v884
        %v886 = vmul.f32 %v873, 1.442695
        %v887 = vpow.pop %v886
        %v888 = vmul.f32 %v874, 1.442695
        %v889 = vpow.pop %v888
        %v890 = vmul.f32 %v875, 1.442695
        %v891 = vpow.pop %v890
        %v892 = vadd.f32 %v877, %v881
        %v893 = vadd.f32 %v892, %v885
        %v894 = vadd.f32 %v893, %v889
        %v895 = vrot.slane %v894, 4
        %v896 = vadd.f32 %v894, %v895
        %v897 = vrot.slane %v896, 2
        %v898 = vadd.f32 %v896, %v897
        %v899 = vrot.slane %v898, 1
        %v900 = vadd.f32 %v898, %v899
        %v901 = vadd.f32 %v879, %v883
        %v902 = vadd.f32 %v901, %v887
        %v903 = vadd.f32 %v902, %v891
        %v904 = vrot.slane %v903, 4
        %v905 = vadd.f32 %v903, %v904
        %v906 = vrot.slane %v905, 2
        %v907 = vadd.f32 %v905, %v906
        %v908 = vrot.slane %v907, 1
        %v909 = vadd.f32 %v907, %v908
        %v910 = vrcp.pop %v900
        %v911 = vrcp.pop %v909
        %v912 = vmul.f32 %v877, %v910
        %v913 = vmul.f32 %v879, %v911
        %v914 = vmul.f32 %v881, %v910
        %v915 = vmul.f32 %v883, %v911
        %v916 = vmul.f32 %v885, %v910
        %v917 = vmul.f32 %v887, %v911
        %v918 = vmul.f32 %v889, %v910
        %v919 = vmul.f32 %v891, %v911
        %920 = vset.pattern.permute.xlu0 2
        %921 = vperm.xlu0 %920, %v770
        %v922 = vpop.permute.xlu0 %921
        %924 = vset.pattern.permute.xlu0 2
        %925 = vperm.xlu0 %924, %v771
        %v926 = vpop.permute.xlu0 %925
        %928 = vset.pattern.permute.xlu0 2
        %929 = vperm.xlu0 %928, %v772
        %v930 = vpop.permute.xlu0 %929
        %932 = vset.pattern.permute.xlu0 2
        %933 = vperm.xlu0 %932, %v773
        %v934 = vpop.permute.xlu0 %933
        %v936 = vmul.f32 %v922, %v912
        %v937 = vmul.f32 %v922, %v913
        %v938 = vmul.f32 %v926, %v914
        %v939 = vmul.f32 %v926, %v915
        %v940 = vmul.f32 %v930, %v916
        %v941 = vmul.f32 %v930, %v917
        %v942 = vmul.f32 %v934, %v918
        %v943 = vmul.f32 %v934, %v919
        %v944 = vadd.f32 %v936, %v938
        %v945 = vadd.f32 %v944, %v940
        %v946 = vadd.f32 %v945, %v942
        %v947 = vrot.slane %v946, 4
        %v948 = vadd.f32 %v946, %v947
        %v949 = vrot.slane %v948, 2
        %v950 = vadd.f32 %v948, %v949
        %v951 = vrot.slane %v950, 1
        %v952 = vadd.f32 %v950, %v951
        %v953 = vadd.f32 %v937, %v939
        %v954 = vadd.f32 %v953, %v941
        %v955 = vadd.f32 %v954, %v943
        %v956 = vrot.slane %v955, 4
        %v957 = vadd.f32 %v955, %v956
        %v958 = vrot.slane %v957, 2
        %v959 = vadd.f32 %v957, %v958
        %v960 = vrot.slane %v959, 1
        %v961 = vadd.f32 %v959, %v960
        %963 = vset.pattern.permute.xlu0 0
        %964 = vperm.xlu0 %963, %v300
        %v965 = vpop.permute.xlu0 %964
        %v967 = vmul.f32 %v965, %v952
        %v968 = vmul.f32 %v965, %v961
        %969 = vset.pattern.permute.xlu0 3
        %970 = vperm.xlu0 %969, %v770
        %v971 = vpop.permute.xlu0 %970
        %973 = vset.pattern.permute.xlu0 3
        %974 = vperm.xlu0 %973, %v771
        %v975 = vpop.permute.xlu0 %974
        %977 = vset.pattern.permute.xlu0 3
        %978 = vperm.xlu0 %977, %v772
        %v979 = vpop.permute.xlu0 %978
        %981 = vset.pattern.permute.xlu0 3
        %982 = vperm.xlu0 %981, %v773
        %v983 = vpop.permute.xlu0 %982
        %v985 = vmul.f32 %v971, %v912
        %v986 = vmul.f32 %v971, %v913
        %v987 = vmul.f32 %v975, %v914
        %v988 = vmul.f32 %v975, %v915
        %v989 = vmul.f32 %v979, %v916
        %v990 = vmul.f32 %v979, %v917
        %v991 = vmul.f32 %v983, %v918
        %v992 = vmul.f32 %v983, %v919
        %v993 = vadd.f32 %v985, %v987
        %v994 = vadd.f32 %v993, %v989
        %v995 = vadd.f32 %v994, %v991
        %v996 = vrot.slane %v995, 4
        %v997 = vadd.f32 %v995, %v996
        %v998 = vrot.slane %v997, 2
        %v999 = vadd.f32 %v997, %v998
        %v1000 = vrot.slane %v999, 1
        %v1001 = vadd.f32 %v999, %v1000
        %v1002 = vadd.f32 %v986, %v988
        %v1003 = vadd.f32 %v1002, %v990
        %v1004 = vadd.f32 %v1003, %v992
        %v1005 = vrot.slane %v1004, 4
        %v1006 = vadd.f32 %v1004, %v1005
        %v1007 = vrot.slane %v1006, 2
        %v1008 = vadd.f32 %v1006, %v1007
        %v1009 = vrot.slane %v1008, 1
        %v1010 = vadd.f32 %v1008, %v1009
        %1011 = vset.pattern.permute.xlu0 1
        %1012 = vperm.xlu0 %1011, %v300
        %v1013 = vpop.permute.xlu0 %1012
        %v1015 = vmul.f32 %v1013, %v1001
        %v1016 = vmul.f32 %v1013, %v1010
        %v1017 = vadd.f32 %v967, %v1015
        %v1018 = vadd.f32 %v968, %v1016
        %1020 = vset.pattern.permute.xlu0 0
        %1021 = vperm.xlu0 %1020, %v301
        %v1022 = vpop.permute.xlu0 %1021
        %v1024 = vadd.f32 %v1017, %v1022
        %v1025 = vadd.f32 %v1018, %v1022
        %v1027 = vadd.f32 %v1024, %v302
        %v1028 = vadd.f32 %v1025, %v309
        %v1031 = vcombine.low %v1027, %v1028
        %1033 = vst [vmem:[%s286] sm:$0xff] %v1031
        %s1034 = sand.u32 %s186, 1
        %s1035 = scalar_lea.sflag [#allocation3], %s1034
        %s1036 = sand.u32 %s186, 1
        %s1037 = smul.addr %s1036, 8
        %s1038 = scalar_lea.vmem [#allocation2], %s1037
        // Predicated region
        $region49: #{tpu_custom_call.1} parent=47 // pred_check
          %p1039 = pneg %p196
        $region50: #{tpu_custom_call.1} parent=47 // pred_check_branch
          %1041 = sbr.rel (%p1039) target = $region52
        $region51: #{tpu_custom_call.1} parent=47 // pred_region
          %s1043 = ssub.s32 128, 128
          %1044 = vsyncadd %s1035, %s1043
          %s1045 = smul.addr %s21, 2
          %s1046 = smul.addr %s1045, 64
          %s1047 = scalar_lea.hbm %s7, %s1046
          %s1049 = sshll.u32 %s1038, 4
          %s1050 = int_to_ptr.vmem [resolvable:$true] %s1049
          %1052 = dma.vmem_to_hbm [thread:$0]  %s1050, 128, %s1047, %s1035
        $region52: #{tpu_custom_call.1} parent=47 // pred_fallthru
          _
      $region48: #{tpu_custom_call.1} parent=5 // pred_fallthru
        _
      %p1053 = scmp.le.s32.totalorder 2, %s16
      // Predicated region
      $region53: #{tpu_custom_call.1} parent=5 // pred_check
        %p1054 = pneg %p1053
      $region54: #{tpu_custom_call.1} parent=5 // pred_check_branch
        %1056 = sbr.rel (%p1054) target = $region56
      $region55: #{tpu_custom_call.1} parent=5 // pred_region
        %s1057 = ssub.s32 %s16, 2
        // Predicated region
        $region57: #{tpu_custom_call.1} parent=55 // pred_check
          %p1058 = pneg %p202
        $region58: #{tpu_custom_call.1} parent=55 // pred_check_branch
          %1060 = sbr.rel (%p1058) target = $region60
        $region59: #{tpu_custom_call.1} parent=55 // pred_region
          %s1061 = sand.u32 %s187, 1
          %s1062 = scalar_lea.sflag [#allocation3], %s1061
          %s1063 = sand.u32 %s187, 1
          %s1064 = smul.addr %s1063, 8
          %s1065 = scalar_lea.vmem [#allocation2], %s1064
          %1066 = dma.done %s1062, 128
        $region60: #{tpu_custom_call.1} parent=55 // pred_fallthru
          _
      $region56: #{tpu_custom_call.1} parent=5 // pred_fallthru
        _
    $region6: #{tpu_custom_call.1} parent=1 // loop_footer
      %s20 = sadd.s32 1, %s16
    $region7: #{tpu_custom_call.1} parent=1 // loop_footer_branch
      %15 = sbr.rel target = $region3
    $region8: #{tpu_custom_call.1} parent=1 // loop_exit
      _
    %1067 = vsyncpa [#allocation3], 1
    %s1068 = scalar_lea.sflag [#allocation3], 1
    %1069 = vsyncpa %s1068, 1

</llo_original>
